<compile_context>
chip_gen: v7x
topology: tpu7x:2x2x1
jax: 0.10.0
libtpu: 0.0.40
codegen_flags: <defaults>
</compile_context>

<pallas_src>
import functools

import jax
import jax.numpy as jnp
from jax.experimental import pallas as pl
from jax.experimental.pallas import tpu as pltpu


def _round_up(x, m):
    return ((x + m - 1) // m) * m


def _vq_kernel(x_ref, e_ref, e2_ref, q_ref, enc_ref, stats_ref, *, n_valid, tile_n):
    """One (TN, D) tile of rows against the resident (K, D) codebook.

    Outputs (per tile):
      q_ref:     (TN, D)   quantized vectors, in the caller's dtype
      enc_ref:   (TN, K)   one-hot encodings (enc dtype, 0/1 exact)
      stats_ref: (1, 2, K) row 0 = per-code counts, row 1 lane 0 = sum sq error
    """
    x = x_ref[...].astype(jnp.float32)   # (TN, D) -> f32 for the distance math
    e = e_ref[...]                       # (K, D)  f32, resident across the grid
    e2 = e2_ref[...]                     # (1, K)  f32, precomputed ||e||^2

    tn, _ = x.shape
    k = e.shape[0]

    # distances' = ||e||^2 - 2 x e^T.  The per-row ||x||^2 term is constant along
    # the codebook axis, so the argmin is unchanged by dropping it.
    xe = jnp.dot(x, e.T, preferred_element_type=jnp.float32)      # (TN, K) MXU
    dist = e2 - 2.0 * xe

    # argmin with first-index tie-break (matches torch.argmin) as min + masked
    # iota-min (avoids relying on argmin lowering).
    min_d = jnp.min(dist, axis=1, keepdims=True)                   # (TN, 1)
    col = jax.lax.broadcasted_iota(jnp.int32, (tn, k), 1)          # (TN, K)
    idx = jnp.min(jnp.where(dist == min_d, col, k), axis=1, keepdims=True)

    # Rows past n_valid only exist in the (OOB-masked) trailing partial block;
    # their VMEM contents are undefined, so gate everything that feeds the
    # reductions on validity.  (Garbage/NaN rows -> enc row of zeros.)
    row = jax.lax.broadcasted_iota(jnp.int32, (tn, 1), 0) + pl.program_id(0) * tile_n
    valid = row < n_valid                                          # (TN, 1) bool

    enc_bool = (col == idx) & valid                                # (TN, K)
    enc_ref[...] = enc_bool.astype(enc_ref.dtype)

    # quantized = encodings @ embedding (invalid rows -> 0, dropped on writeback)
    enc_f = enc_bool.astype(jnp.float32)
    q = jnp.dot(enc_f, e, preferred_element_type=jnp.float32)      # (TN, D) MXU
    q_ref[...] = q.astype(q_ref.dtype)

    # Partial sum of squared error; jnp.where (not *mask) so NaN in OOB tail rows
    # can never leak into the reduction.
    diff = jnp.where(valid, q - x, 0.0)
    sq = jnp.sum(diff * diff)                                      # scalar f32

    # Per-code counts on the MXU (ones @ enc); keeps the VPU/XLU free.
    cnt = jnp.dot(jnp.ones((1, tn), jnp.float32), enc_f,
                  preferred_element_type=jnp.float32)              # (1, K)

    # Merge both stats into one (1, 2, K) block -> a single small DMA per step.
    row_id = jax.lax.broadcasted_iota(jnp.int32, (1, 2, k), 1)
    lane_id = jax.lax.broadcasted_iota(jnp.int32, (1, 2, k), 2)
    stats_ref[...] = jnp.where(row_id == 0, cnt.reshape(1, 1, k),
                               jnp.where(lane_id == 0, sq, 0.0))


def _vmem_budget(num_codes, d):
    """Generation-aware VMEM limits: (working-set budget, vmem_limit_bytes)."""
    try:
        cap = int(pltpu.get_tpu_info().vmem_capacity_bytes)
    except Exception:
        cap = 64 * 1024 * 1024          # conservative default = v7x per-TC VMEM
    # ~48 MiB limit on 64 MiB parts (v7x), ~96 MiB on 128 MiB parts (v5e/v6e).
    vmem_limit = min(cap * 3 // 4, 112 * 1024 * 1024)
    # Resident (double-buffered) codebook + ||e||^2 blocks, lane-padded.
    resident = 2 * (_round_up(num_codes, 8) * _round_up(d, 128) * 4
                    + 8 * _round_up(num_codes, 128) * 4)
    budget = max(4 * 1024 * 1024, int(vmem_limit * 0.6) - resident)
    return budget, int(vmem_limit)


def _pick_tile_n(n_rows, d, num_codes, x_itemsize, q_itemsize, enc_itemsize,
                 budget_bytes, granule):
    """Rows per tile, using *lane-padded* VMEM bytes (last dims pad to 128)."""
    dp = _round_up(d, 128)
    kp = _round_up(num_codes, 128)
    # Double-buffered streamed blocks: x, q (input dtype) and enc (enc dtype).
    stream_bytes = 2 * (x_itemsize * dp + q_itemsize * dp + enc_itemsize * kp)
    # In-kernel f32 temporaries: ~5 arrays of (TN, Kp) (xe, dist, col, enc_f,
    # where-temps) and ~3 of (TN, Dp) (x_f32, q, diff).
    temp_bytes = 4 * (5 * kp + 3 * dp)
    row_bytes = stream_bytes + temp_bytes

    tn = max(granule, budget_bytes // row_bytes)
    tn = min(tn, 8192)                       # keep each DMA block a few MiB
    # >= 2 grid steps when possible so the "parallel" axis fills both v7x cores.
    half = _round_up(pl.cdiv(n_rows, 2), granule)
    tn = min(tn, max(half, granule))
    tn = min(tn, _round_up(n_rows, granule))
    return int(max(granule, (tn // granule) * granule))


def vector_quantizer_ema_forward(inputs, embedding, commitment_cost, *,
                                 tile_n=None, enc_dtype=jnp.int8):
    """Eval-mode forward of VectorQuantizerEMA.

    inputs:    (..., D) float, channels-last (D == embedding_dim)
    embedding: (K, D) float codebook
    returns:   (loss, quantized (inputs.shape, inputs.dtype), perplexity,
                encodings (N, K) in enc_dtype -- values 0/1 exact)
    """
    input_shape = inputs.shape
    num_codes, d = embedding.shape
    in_dtype = inputs.dtype

    flat = inputs.reshape(-1, d)                 # caller dtype; cast in-kernel
    emb = embedding.astype(jnp.float32)
    n = flat.shape[0]

    granule = 32                                 # covers f32 / bf16 / int8 sublane packing
    padded_rows = 0
    if n < granule:                              # tiny-N fallback only
        padded_rows = granule - n
        flat = jnp.pad(flat, ((0, padded_rows), (0, 0)))
    n_rows = n + padded_rows

    budget, vmem_limit = _vmem_budget(num_codes, d)
    if tile_n is None:
        tn = _pick_tile_n(n_rows, d, num_codes,
                          jnp.dtype(in_dtype).itemsize,
                          jnp.dtype(in_dtype).itemsize,
                          jnp.dtype(enc_dtype).itemsize,
                          budget, granule)
    else:
        tn = _round_up(min(tile_n, _round_up(n_rows, granule)), granule)
    num_tiles = pl.cdiv(n_rows, tn)

    # ||e||^2, hoisted out of the per-tile body.
    e2 = jnp.sum(emb * emb, axis=1).reshape(1, num_codes)

    kernel = functools.partial(_vq_kernel, n_valid=n, tile_n=tn)

    q_flat, encodings, stats = pl.pallas_call(
        kernel,
        grid=(num_tiles,),
        in_specs=[
            pl.BlockSpec((tn, d), lambda i: (i, 0)),            # x tile (caller dtype)
            pl.BlockSpec((num_codes, d), lambda i: (0, 0)),     # codebook (resident)
            pl.BlockSpec((1, num_codes), lambda i: (0, 0)),     # ||e||^2 (resident)
        ],
        out_specs=(
            pl.BlockSpec((tn, d), lambda i: (i, 0)),            # quantized tile
            pl.BlockSpec((tn, num_codes), lambda i: (i, 0)),    # one-hot tile
            pl.BlockSpec((1, 2, num_codes), lambda i: (i, 0, 0)),  # merged stats
        ),
        out_shape=(
            jax.ShapeDtypeStruct((n_rows, d), in_dtype),
            jax.ShapeDtypeStruct((n_rows, num_codes), enc_dtype),
            jax.ShapeDtypeStruct((num_tiles, 2, num_codes), jnp.float32),
        ),
        compiler_params=pltpu.CompilerParams(
            dimension_semantics=("parallel",),
            vmem_limit_bytes=vmem_limit,
        ),
    )(flat, emb, e2)

    if padded_rows:
        q_flat = q_flat[:n]
        encodings = encodings[:n]
    quantized = q_flat.reshape(input_shape)

    # e_latent_loss = mse(quantized, inputs)  (mean over all elements)
    e_latent_loss = jnp.sum(stats[:, 1, 0]) / jnp.float32(n * d)
    loss = commitment_cost * e_latent_loss

    # straight-through estimator: inputs + (quantized - inputs).detach();
    # the forward value is identical to `quantized`.

    avg_probs = jnp.sum(stats[:, 0, :], axis=0) / jnp.float32(n)   # (K,)
    perplexity = jnp.exp(-jnp.sum(avg_probs * jnp.log(avg_probs + 1e-10)))
    return loss, quantized, perplexity, encodings


if __name__ == "__main__":
    # Module hyperparameters (synthetic, deterministic init).
    num_embeddings = 32     # K
    embedding_dim = 16      # D
    commitment_cost = 0.25
    # decay / epsilon only used in the (stateful) training branch — not implemented.

    key = jax.random.PRNGKey(0)
    key_emb, key_x = jax.random.split(key)

    # embedding.weight.data.normal_()
    embedding = jax.random.normal(key_emb, (num_embeddings, embedding_dim), jnp.float32)

    # (B, H, W, D) channels-last -> N = 2*8*8 = 128 rows
    x = jax.random.normal(key_x, (2, 8, 8, embedding_dim), jnp.float32)

    def reference(x_in):
        """Pure-JAX reference of the torch forward (full distance formula)."""
        flat = x_in.reshape(-1, embedding_dim).astype(jnp.float32)
        dist = (jnp.sum(flat ** 2, axis=1, keepdims=True)
                + jnp.sum(embedding ** 2, axis=1)
                - 2.0 * flat @ embedding.T)
        idx = jnp.argmin(dist, axis=1)
        enc = jax.nn.one_hot(idx, num_embeddings, dtype=jnp.float32)
        q = enc @ embedding
        loss = commitment_cost * jnp.mean((q - flat) ** 2)
        p = jnp.mean(enc, axis=0)
        perp = jnp.exp(-jnp.sum(p * jnp.log(p + 1e-10)))
        return loss, q.reshape(x_in.shape), perp, enc

    # 1) auto tile (64 -> two full blocks), int8 encodings
    # 2) tile_n=96 -> partial trailing block + OOB-row masking, float32 encodings
    # 3) bf16 inputs -> caller-dtype x / quantized streams
    cases = [
        dict(x=x, tile_n=None, enc_dtype=jnp.int8),
        dict(x=x, tile_n=96, enc_dtype=jnp.float32),
        dict(x=x.astype(jnp.bfloat16), tile_n=None, enc_dtype=jnp.int8),
    ]
    for case in cases:
        xi = case["x"]
        loss, quantized, perplexity, encodings = vector_quantizer_ema_forward(
            xi, embedding, commitment_cost,
            tile_n=case["tile_n"], enc_dtype=case["enc_dtype"])
        jax.block_until_ready((loss, quantized, perplexity, encodings))

        ref_loss, ref_q, ref_perp, ref_enc = reference(xi)

        n_rows = xi.reshape(-1, embedding_dim).shape[0]
        assert quantized.shape == xi.shape and quantized.dtype == xi.dtype
        assert encodings.shape == (n_rows, num_embeddings)
        assert encodings.dtype == jnp.dtype(case["enc_dtype"])
        assert jnp.allclose(quantized.astype(jnp.float32),
                            ref_q.astype(quantized.dtype).astype(jnp.float32),
                            atol=1e-5, rtol=1e-5)
        assert jnp.allclose(encodings.astype(jnp.float32), ref_enc)
        assert jnp.allclose(loss, ref_loss, atol=1e-6, rtol=1e-5)
        assert jnp.allclose(perplexity, ref_perp, atol=1e-4, rtol=1e-5)

    print("KERNEL_OK")
</pallas_src>

<mosaic_0001>
module attributes {stable_mosaic.version = 11 : i64} {
  func.func @_vq_kernel(%arg0: i32, %arg1: memref<64x16xf32, #tpu.memory_space<vmem>>, %arg2: memref<32x16xf32, #tpu.memory_space<vmem>>, %arg3: memref<1x32xf32, #tpu.memory_space<vmem>>, %arg4: memref<64x16xf32, #tpu.memory_space<vmem>>, %arg5: memref<64x32xi8, #tpu.memory_space<vmem>>, %arg6: memref<1x2x32xf32, #tpu.memory_space<vmem>>) attributes {dimension_semantics = [#tpu.dimension_semantics<parallel>], iteration_bounds = array<i64: 2>, scalar_prefetch = 0 : i64, scratch_operands = 0 : i64, tpu.core_type = #tpu.core_type<tc>, window_params = [{transform_indices = @transform_0, window_bounds = array<i64: 64, 16>}, {pipeline_mode = #tpu.pipeline_mode<synchronous>, transform_indices = @transform_1, window_bounds = array<i64: 32, 16>}, {pipeline_mode = #tpu.pipeline_mode<synchronous>, transform_indices = @transform_2, window_bounds = array<i64: 1, 32>}, {transform_indices = @transform_3, window_bounds = array<i64: 64, 16>}, {transform_indices = @transform_4, window_bounds = array<i64: 64, 32>}, {transform_indices = @transform_5, window_bounds = array<i64: 1, 2, 32>}]} {
    %c0 = arith.constant 0 : index
    %c0_0 = arith.constant 0 : index
    %0 = vector.load %arg1[%c0, %c0_0] : memref<64x16xf32, #tpu.memory_space<vmem>>, vector<64x16xf32>
    %c0_1 = arith.constant 0 : index
    %c0_2 = arith.constant 0 : index
    %1 = vector.load %arg2[%c0_1, %c0_2] : memref<32x16xf32, #tpu.memory_space<vmem>>, vector<32x16xf32>
    %c0_3 = arith.constant 0 : index
    %c0_4 = arith.constant 0 : index
    %2 = vector.load %arg3[%c0_3, %c0_4] : memref<1x32xf32, #tpu.memory_space<vmem>>, vector<1x32xf32>
    %3 = tpu.transpose %1, [1, 0] : vector<32x16xf32> -> vector<16x32xf32>
    %cst = arith.constant dense<0.000000e+00> : vector<64x32xf32>
    %4 = tpu.matmul %0, %3, %cst {dimension_numbers = #tpu.dot_dimension_numbers<[1], [0], [0], [1], [0, 0, 1, 1], [], []>} : vector<64x16xf32>, vector<16x32xf32>, vector<64x32xf32> -> vector<64x32xf32>
    %cst_5 = arith.constant 2.000000e+00 : f32
    %5 = vector.broadcast %cst_5 : f32 to vector<64x32xf32>
    %6 = arith.mulf %5, %4 : vector<64x32xf32>
    %7 = vector.broadcast %2 : vector<1x32xf32> to vector<64x32xf32>
    %8 = arith.subf %7, %6 : vector<64x32xf32>
    %cst_6 = arith.constant dense<0x7F800000> : vector<64xf32>
    %9 = vector.multi_reduction <minimumf>, %8, %cst_6 [1] : vector<64x32xf32> to vector<64xf32>
    %10 = vector.shape_cast %9 : vector<64xf32> to vector<64x1xf32>
    %11 = tpu.iota {dimensions = array<i32: 1>} : vector<64x32xi32>
    %12 = vector.broadcast %10 : vector<64x1xf32> to vector<64x32xf32>
    %13 = arith.cmpf oeq, %8, %12 : vector<64x32xf32>
    %c32_i32 = arith.constant 32 : i32
    %14 = vector.broadcast %c32_i32 : i32 to vector<64x32xi32>
    %15 = arith.select %13, %11, %14 : vector<64x32xi1>, vector<64x32xi32>
    %cst_7 = arith.constant dense<2147483647> : vector<64xi32>
    %16 = vector.multi_reduction <minsi>, %15, %cst_7 [1] : vector<64x32xi32> to vector<64xi32>
    %17 = vector.shape_cast %16 : vector<64xi32> to vector<64x1xi32>
    %18 = tpu.iota {dimensions = array<i32: 0>} : vector<64x1xi32>
    %c64_i32 = arith.constant 64 : i32
    %19 = arith.muli %arg0, %c64_i32 : i32
    %20 = vector.broadcast %19 : i32 to vector<64x1xi32>
    %21 = arith.addi %18, %20 : vector<64x1xi32>
    %c128_i32 = arith.constant 128 : i32
    %22 = vector.broadcast %c128_i32 : i32 to vector<64x1xi32>
    %23 = arith.cmpi slt, %21, %22 : vector<64x1xi32>
    %24 = vector.broadcast %17 : vector<64x1xi32> to vector<64x32xi32>
    %25 = arith.cmpi eq, %11, %24 : vector<64x32xi32>
    %26 = vector.broadcast %23 : vector<64x1xi1> to vector<64x32xi1>
    %27 = arith.andi %25, %26 : vector<64x32xi1>
    %28 = arith.extui %27 : vector<64x32xi1> to vector<64x32xi8>
    %c0_8 = arith.constant 0 : index
    %c0_9 = arith.constant 0 : index
    %29 = vector.load %arg5[%c0_8, %c0_9] : memref<64x32xi8, #tpu.memory_space<vmem>>, vector<64x32xi8>
    tpu.vector_store %arg5[%c0_8, %c0_9], %28 {strides = array<i32>} : memref<64x32xi8, #tpu.memory_space<vmem>>, vector<64x32xi8>,
    %30 = arith.extui %27 : vector<64x32xi1> to vector<64x32xi32>
    %31 = arith.sitofp %30 : vector<64x32xi32> to vector<64x32xf32>
    %cst_10 = arith.constant dense<0.000000e+00> : vector<64x16xf32>
    %32 = tpu.matmul %31, %1, %cst_10 {dimension_numbers = #tpu.dot_dimension_numbers<[1], [0], [0], [1], [0, 0, 1, 1], [], []>} : vector<64x32xf32>, vector<32x16xf32>, vector<64x16xf32> -> vector<64x16xf32>
    %c0_11 = arith.constant 0 : index
    %c0_12 = arith.constant 0 : index
    %33 = vector.load %arg4[%c0_11, %c0_12] : memref<64x16xf32, #tpu.memory_space<vmem>>, vector<64x16xf32>
    tpu.vector_store %arg4[%c0_11, %c0_12], %32 {strides = array<i32>} : memref<64x16xf32, #tpu.memory_space<vmem>>, vector<64x16xf32>,
    %34 = arith.subf %32, %0 : vector<64x16xf32>
    %cst_13 = arith.constant 0.000000e+00 : f32
    %35 = vector.shape_cast %23 : vector<64x1xi1> to vector<64x1xi1>
    %36 = vector.broadcast %35 : vector<64x1xi1> to vector<64x16xi1>
    %37 = vector.broadcast %cst_13 : f32 to vector<64x16xf32>
    %38 = arith.select %36, %34, %37 : vector<64x16xi1>, vector<64x16xf32>
    %39 = arith.mulf %38, %38 : vector<64x16xf32>
    %40 = vector.shape_cast %39 : vector<64x16xf32> to vector<1x64x16xf32>
    %cst_14 = arith.constant dense<0.000000e+00> : vector<1xf32>
    %41 = vector.multi_reduction <add>, %40, %cst_14 [1, 2] : vector<1x64x16xf32> to vector<1xf32>
    %42 = vector.shape_cast %41 : vector<1xf32> to vector<1x1x1xf32>
    %43 = vector.extract %42[0, 0, 0] : f32 from vector<1x1x1xf32>
    %cst_15 = arith.constant 1.000000e+00 : f32
    %44 = vector.broadcast %cst_15 : f32 to vector<1x64xf32>
    %cst_16 = arith.constant dense<0.000000e+00> : vector<1x32xf32>
    %45 = tpu.matmul %44, %31, %cst_16 {dimension_numbers = #tpu.dot_dimension_numbers<[1], [0], [0], [1], [0, 0, 1, 1], [], []>} : vector<1x64xf32>, vector<64x32xf32>, vector<1x32xf32> -> vector<1x32xf32>
    %46 = tpu.iota {dimensions = array<i32: 1>} : vector<1x2x32xi32>
    %47 = tpu.iota {dimensions = array<i32: 2>} : vector<1x2x32xi32>
    %c0_i32 = arith.constant 0 : i32
    %48 = vector.broadcast %c0_i32 : i32 to vector<1x2x32xi32>
    %49 = arith.cmpi eq, %46, %48 : vector<1x2x32xi32>
    %50 = vector.shape_cast %45 : vector<1x32xf32> to vector<1x1x32xf32>
    %c0_i32_17 = arith.constant 0 : i32
    %51 = vector.broadcast %c0_i32_17 : i32 to vector<1x2x32xi32>
    %52 = arith.cmpi eq, %47, %51 : vector<1x2x32xi32>
    %cst_18 = arith.constant 0.000000e+00 : f32
    %53 = vector.broadcast %43 : f32 to vector<1x2x32xf32>
    %54 = vector.broadcast %cst_18 : f32 to vector<1x2x32xf32>
    %55 = arith.select %52, %53, %54 : vector<1x2x32xi1>, vector<1x2x32xf32>
    %56 = vector.shape_cast %50 : vector<1x1x32xf32> to vector<1x1x32xf32>
    %57 = vector.broadcast %56 : vector<1x1x32xf32> to vector<1x2x32xf32>
    %58 = arith.select %49, %57, %55 : vector<1x2x32xi1>, vector<1x2x32xf32>
    %c0_19 = arith.constant 0 : index
    %c0_20 = arith.constant 0 : index
    %c0_21 = arith.constant 0 : index
    %59 = vector.load %arg6[%c0_19, %c0_20, %c0_21] : memref<1x2x32xf32, #tpu.memory_space<vmem>>, vector<1x2x32xf32>
    tpu.vector_store %arg6[%c0_19, %c0_20, %c0_21], %58 {strides = array<i32>} : memref<1x2x32xf32, #tpu.memory_space<vmem>>, vector<1x2x32xf32>,
    return
  }
  func.func @transform_0(%arg0: i32) -> (i32, i32) {
    %c0_i32 = arith.constant 0 : i32
    %c0_i32_0 = arith.constant 0 : i32
    return %arg0, %c0_i32 : i32, i32
  }
  func.func @transform_1(%arg0: i32) -> (i32, i32) {
    %c0_i32 = arith.constant 0 : i32
    %c0_i32_0 = arith.constant 0 : i32
    %c0_i32_1 = arith.constant 0 : i32
    return %c0_i32, %c0_i32_0 : i32, i32
  }
  func.func @transform_2(%arg0: i32) -> (i32, i32) {
    %c0_i32 = arith.constant 0 : i32
    %c0_i32_0 = arith.constant 0 : i32
    %c0_i32_1 = arith.constant 0 : i32
    return %c0_i32, %c0_i32_0 : i32, i32
  }
  func.func @transform_3(%arg0: i32) -> (i32, i32) {
    %c0_i32 = arith.constant 0 : i32
    %c0_i32_0 = arith.constant 0 : i32
    return %arg0, %c0_i32 : i32, i32
  }
  func.func @transform_4(%arg0: i32) -> (i32, i32) {
    %c0_i32 = arith.constant 0 : i32
    %c0_i32_0 = arith.constant 0 : i32
    return %arg0, %c0_i32 : i32, i32
  }
  func.func @transform_5(%arg0: i32) -> (i32, i32, i32) {
    %c0_i32 = arith.constant 0 : i32
    %c0_i32_0 = arith.constant 0 : i32
    %c0_i32_1 = arith.constant 0 : i32
    return %arg0, %c0_i32, %c0_i32_0 : i32, i32, i32
  }
}

</mosaic_0001>

<llo_original>
// kernel: tpu_custom_call.1
$region0: #{tpu_custom_call.1}
  #allocation0 [shape = 'u32[]', space=smem, size = 0x4, offset = 0x4, fixed_abs, tag = 'smem constant byte address 0x4 - core index']
  #allocation1 [shape = 'u32[144,128]{1,0:T(1,128)}', space=vmem, size = 0x12000, scoped, tag = 'internal scratch']
  %s0 = inlined_call_operand.vmem [shape: f32[128,16], index: 0, kind: input, shape index: {}]
  %s1 = inlined_call_operand.vmem [shape: f32[32,16], index: 1, kind: input, shape index: {}]
  %s2 = inlined_call_operand.vmem [shape: f32[1,32], index: 2, kind: input, shape index: {}]
  %s3 = inlined_call_operand.vmem [shape: f32[128,16], index: 3, kind: output, shape index: {0}]
  %s4 = inlined_call_operand.vmem [shape: s8[128,32], index: 4, kind: output, shape index: {1}]
  %s5 = inlined_call_operand.hbm [shape: f32[2,2,32], index: 5, kind: output, shape index: {2}]
  %6 = xla_tuple %s3, %s4, %s5
  %s7 = sld [smem:[#allocation0]]
  $region61: #{tpu_custom_call.1} parent=0
    _
  %s9 = ssub.s32 1, %s7
  %s10 = scalar_select 0, %s9, %s7
  $region1: #{tpu_custom_call.1} parent=0
    #allocation2 [shape = 'u8[2048]{0}', space=vmem, size = 0x800, scoped, tag = 'output window, operand 2']
    #allocation3 [shape = 's32[2]{0}', space=sflag, size = 0x8, scoped, tag = 'scoped memory for tpu_custom_call.1']
    %11 = vsyncpa [#allocation3], 0
    %s12 = scalar_lea.sflag [#allocation3], 1
    %13 = vsyncpa %s12, 0
    loop: start=0, step=1, limit=4
    $region2: #{tpu_custom_call.1} parent=1 // loop_pre_header
      _
    $region3: #{tpu_custom_call.1} parent=1 // loop_header
      %s15 = sphi 0, %s19
      %p16 = scmp.ge.s32.totalorder %s15, 4
      %s25 = sphi 0, %s27
      %s28 = sphi 0, %s25
      %s29 = sphi 0, %s28
      %s45 = sphi 0, %s29
      %s49 = sphi 0, %s49
      %s51 = sphi 0, %s49
      %s52 = sphi 0, %s51
      %s66 = sphi 0, %s52
      %s70 = sphi 0, %s70
      %s72 = sphi 0, %s70
      %s73 = sphi 0, %s72
      %s87 = sphi 0, %s73
      %s93 = sphi 0, %s95
      %s96 = sphi 0, %s93
      %s97 = sphi 0, %s96
      %s113 = sphi 0, %s97
      %s119 = sphi 0, %s121
      %s122 = sphi 0, %s119
      %s123 = sphi 0, %s122
      %s139 = sphi 0, %s123
      %s145 = sphi 0, %s147
      %s148 = sphi 0, %s145
      %s149 = sphi 0, %s148
      %s165 = sphi 0, %s149
    $region4: #{tpu_custom_call.1} parent=1 // loop_header_branch
      %18 = sbr.rel (%p16) target = $region8
    $region5: #{tpu_custom_call.1} parent=1 // loop_body
      %s20 = ssub.s32 %s15, 1
      %s21 = ssub.s32 %s15, 2
      %s22 = sadd.s32 %s15, 1
      %s23 = ssub.s32 %s15, %s22
      %p24 = scmp.eq.s32.totalorder %s23, 0
      %s26 = sadd.s32 %s25, 1
      %s27 = scalar_select %p24, %s25, %s26
      %p30 = pneg %p24
      %p31 = scmp.eq.s32.totalorder %s15, 1
      %p32 = por %p30, %p31
      %p33 = scmp.ne.s32.totalorder %s25, %s28
      %p34 = scmp.eq.s32.totalorder %s15, 0
      %p35 = por %p33, %p34
      %p36 = scmp.ne.s32.totalorder %s25, %s28
      %p37 = scmp.eq.s32.totalorder %s20, 1
      %p38 = por %p36, %p37
      %p39 = scmp.ne.s32.totalorder %s28, %s29
      %p40 = scmp.eq.s32.totalorder %s20, 0
      %p41 = por %p39, %p40
      %p42 = scmp.ne.s32.totalorder %s28, %s29
      %p43 = scmp.eq.s32.totalorder %s21, 1
      %p44 = por %p42, %p43
      %p46 = scmp.ne.s32.totalorder %s29, %s45
      %p47 = scmp.eq.s32.totalorder %s21, 0
      %p48 = por %p46, %p47
      %s50 = sadd.s32 %s49, 1
      %p53 = scmp.eq.s32.totalorder %s15, 1
      %p54 = scmp.ne.s32.totalorder %s49, %s51
      %p55 = scmp.eq.s32.totalorder %s15, 0
      %p56 = por %p54, %p55
      %p57 = scmp.ne.s32.totalorder %s49, %s51
      %p58 = scmp.eq.s32.totalorder %s20, 1
      %p59 = por %p57, %p58
      %p60 = scmp.ne.s32.totalorder %s51, %s52
      %p61 = scmp.eq.s32.totalorder %s20, 0
      %p62 = por %p60, %p61
      %p63 = scmp.ne.s32.totalorder %s51, %s52
      %p64 = scmp.eq.s32.totalorder %s21, 1
      %p65 = por %p63, %p64
      %p67 = scmp.ne.s32.totalorder %s52, %s66
      %p68 = scmp.eq.s32.totalorder %s21, 0
      %p69 = por %p67, %p68
      %s71 = sadd.s32 %s70, 1
      %p74 = scmp.eq.s32.totalorder %s15, 1
      %p75 = scmp.ne.s32.totalorder %s70, %s72
      %p76 = scmp.eq.s32.totalorder %s15, 0
      %p77 = por %p75, %p76
      %p78 = scmp.ne.s32.totalorder %s70, %s72
      %p79 = scmp.eq.s32.totalorder %s20, 1
      %p80 = por %p78, %p79
      %p81 = scmp.ne.s32.totalorder %s72, %s73
      %p82 = scmp.eq.s32.totalorder %s20, 0
      %p83 = por %p81, %p82
      %p84 = scmp.ne.s32.totalorder %s72, %s73
      %p85 = scmp.eq.s32.totalorder %s21, 1
      %p86 = por %p84, %p85
      %p88 = scmp.ne.s32.totalorder %s73, %s87
      %p89 = scmp.eq.s32.totalorder %s21, 0
      %p90 = por %p88, %p89
      %s91 = ssub.s32 %s15, %s22
      %p92 = scmp.eq.s32.totalorder %s91, 0
      %s94 = sadd.s32 %s93, 1
      %s95 = scalar_select %p92, %s93, %s94
      %p98 = pneg %p92
      %p99 = scmp.eq.s32.totalorder %s15, 1
      %p100 = por %p98, %p99
      %p101 = scmp.ne.s32.totalorder %s93, %s96
      %p102 = scmp.eq.s32.totalorder %s15, 0
      %p103 = por %p101, %p102
      %p104 = scmp.ne.s32.totalorder %s93, %s96
      %p105 = scmp.eq.s32.totalorder %s20, 1
      %p106 = por %p104, %p105
      %p107 = scmp.ne.s32.totalorder %s96, %s97
      %p108 = scmp.eq.s32.totalorder %s20, 0
      %p109 = por %p107, %p108
      %p110 = scmp.ne.s32.totalorder %s96, %s97
      %p111 = scmp.eq.s32.totalorder %s21, 1
      %p112 = por %p110, %p111
      %p114 = scmp.ne.s32.totalorder %s97, %s113
      %p115 = scmp.eq.s32.totalorder %s21, 0
      %p116 = por %p114, %p115
      %s117 = ssub.s32 %s15, %s22
      %p118 = scmp.eq.s32.totalorder %s117, 0
      %s120 = sadd.s32 %s119, 1
      %s121 = scalar_select %p118, %s119, %s120
      %p124 = pneg %p118
      %p125 = scmp.eq.s32.totalorder %s15, 1
      %p126 = por %p124, %p125
      %p127 = scmp.ne.s32.totalorder %s119, %s122
      %p128 = scmp.eq.s32.totalorder %s15, 0
      %p129 = por %p127, %p128
      %p130 = scmp.ne.s32.totalorder %s119, %s122
      %p131 = scmp.eq.s32.totalorder %s20, 1
      %p132 = por %p130, %p131
      %p133 = scmp.ne.s32.totalorder %s122, %s123
      %p134 = scmp.eq.s32.totalorder %s20, 0
      %p135 = por %p133, %p134
      %p136 = scmp.ne.s32.totalorder %s122, %s123
      %p137 = scmp.eq.s32.totalorder %s21, 1
      %p138 = por %p136, %p137
      %p140 = scmp.ne.s32.totalorder %s123, %s139
      %p141 = scmp.eq.s32.totalorder %s21, 0
      %p142 = por %p140, %p141
      %s143 = ssub.s32 %s15, %s22
      %p144 = scmp.eq.s32.totalorder %s143, 0
      %s146 = sadd.s32 %s145, 1
      %s147 = scalar_select %p144, %s145, %s146
      %p150 = pneg %p144
      %p151 = scmp.eq.s32.totalorder %s15, 1
      %p152 = por %p150, %p151
      %p153 = scmp.ne.s32.totalorder %s145, %s148
      %p154 = scmp.eq.s32.totalorder %s15, 0
      %p155 = por %p153, %p154
      %p156 = scmp.ne.s32.totalorder %s145, %s148
      %p157 = scmp.eq.s32.totalorder %s20, 1
      %p158 = por %p156, %p157
      %p159 = scmp.ne.s32.totalorder %s148, %s149
      %p160 = scmp.eq.s32.totalorder %s20, 0
      %p161 = por %p159, %p160
      %p162 = scmp.ne.s32.totalorder %s148, %s149
      %p163 = scmp.eq.s32.totalorder %s21, 1
      %p164 = por %p162, %p163
      %p166 = scmp.ne.s32.totalorder %s149, %s165
      %p167 = scmp.eq.s32.totalorder %s21, 0
      %p168 = por %p166, %p167
      %p169 = scmp.le.s32.totalorder 1, %s15
      %p170 = scmp.lt.s32.totalorder %s15, 3
      %p171 = pnand %p169, %p170
      %p172 = pneg %p171
      // Predicated region
      $region9: #{tpu_custom_call.1} parent=5 // pred_check
        _
      $region10: #{tpu_custom_call.1} parent=5 // pred_check_branch
        %174 = sbr.rel (%p171) target = $region12
      $region11: #{tpu_custom_call.1} parent=5 // pred_region
        %s175 = ssub.s32 %s15, 1
        // Predicated region
        $region13: #{tpu_custom_call.1} parent=11 // pred_check
          %p176 = pneg %p62
        $region14: #{tpu_custom_call.1} parent=11 // pred_check_branch
          %178 = sbr.rel (%p176) target = $region16
        $region15: #{tpu_custom_call.1} parent=11 // pred_region
          _
        $region16: #{tpu_custom_call.1} parent=11 // pred_fallthru
          _
        // Predicated region
        $region17: #{tpu_custom_call.1} parent=11 // pred_check
          %p179 = pneg %p83
        $region18: #{tpu_custom_call.1} parent=11 // pred_check_branch
          %181 = sbr.rel (%p179) target = $region20
        $region19: #{tpu_custom_call.1} parent=11 // pred_region
          _
        $region20: #{tpu_custom_call.1} parent=11 // pred_fallthru
          _
      $region12: #{tpu_custom_call.1} parent=5 // pred_fallthru
        _
      %p182 = scmp.lt.s32.totalorder %s15, 2
      // Predicated region
      $region21: #{tpu_custom_call.1} parent=5 // pred_check
        %p183 = pneg %p182
      $region22: #{tpu_custom_call.1} parent=5 // pred_check_branch
        %185 = sbr.rel (%p183) target = $region24
      $region23: #{tpu_custom_call.1} parent=5 // pred_region
        // Predicated region
        $region25: #{tpu_custom_call.1} parent=23 // pred_check
          %p186 = pneg %p35
        $region26: #{tpu_custom_call.1} parent=23 // pred_check_branch
          %188 = sbr.rel (%p186) target = $region28
        $region27: #{tpu_custom_call.1} parent=23 // pred_region
          %s189 = smul.u32 8, %s15
          %p190 = scmp.lt.s32.totalorder %s189, 15
          %s191 = scalar_select %p190, %s189, 15
          %s192 = smul.addr %s191, 8
          %s193 = scalar_lea.vmem %s0, %s192
          %s194 = smul.u32 8, %s15
        $region28: #{tpu_custom_call.1} parent=23 // pred_fallthru
          _
      $region24: #{tpu_custom_call.1} parent=5 // pred_fallthru
        _
      %p195 = scmp.le.s32.totalorder 1, %s15
      %p196 = scmp.lt.s32.totalorder %s15, 3
      %p197 = pnand %p195, %p196
      %p198 = pneg %p197
      // Predicated region
      $region29: #{tpu_custom_call.1} parent=5 // pred_check
        _
      $region30: #{tpu_custom_call.1} parent=5 // pred_check_branch
        %200 = sbr.rel (%p197) target = $region32
      $region31: #{tpu_custom_call.1} parent=5 // pred_region
        %s201 = ssub.s32 %s15, 1
        %s202 = smul.u32 8, %s20
        %p203 = scmp.lt.s32.totalorder %s202, 15
        %s204 = scalar_select %p203, %s202, 15
        %s205 = smul.addr %s204, 8
        %s206 = scalar_lea.vmem %s0, %s205
        %p207 = pneg %p41
        %p208 = pneg %p38
        %p209 = pneg %p62
        %p210 = pneg %p59
        %p211 = pneg %p83
        %p212 = pneg %p80
        %p213 = pneg %p109
        %p214 = pneg %p106
        %s215 = smul.u32 8, %s20
        %p216 = scmp.lt.s32.totalorder %s215, 15
        %s217 = scalar_select %p216, %s215, 15
        %s218 = smul.addr %s217, 8
        %s219 = scalar_lea.vmem %s3, %s218
        %p220 = pneg %p135
        %p221 = pneg %p132
        %s222 = smul.u32 2, %s20
        %p223 = scmp.lt.s32.totalorder %s222, 3
        %s224 = scalar_select %p223, %s222, 3
        %s225 = smul.addr %s224, 8
        %s226 = scalar_lea.vmem %s4, %s225
        %p227 = pneg %p161
        %p228 = pneg %p158
        %s229 = sand.u32 %s148, 1
        %s230 = scalar_lea.sflag [#allocation3], %s229
        %s231 = sand.u32 %s148, 1
        %s232 = smul.addr %s231, 2
        %s233 = scalar_lea.vmem [#allocation2], %s232
        %s234 = smul.u32 8, %s20
        %p235 = scmp.lt.s32.totalorder %s234, 15
        %s236 = scalar_select %p235, %s234, 15
        %s237 = smul.addr %s236, 8
        %s238 = scalar_lea.vmem %s0, %s237
        %s239 = smul.u32 8, %s20
        %s240 = smul.u32 8, %s20
        %p241 = scmp.lt.s32.totalorder %s240, 15
        %s242 = scalar_select %p241, %s240, 15
        %s243 = smul.addr %s242, 8
        %s244 = scalar_lea.vmem %s3, %s243
        %s245 = smul.u32 8, %s20
        %s246 = smul.u32 2, %s20
        %p247 = scmp.lt.s32.totalorder %s246, 3
        %s248 = scalar_select %p247, %s246, 3
        %s249 = smul.addr %s248, 8
        %s250 = scalar_lea.vmem %s4, %s249
        %s251 = smul.u32 2, %s20
        %v254 = vld [vmem:[%s238] sm:$0xff]
        %v255 = vld [vmem:[%s238 + $0x8] sm:$0xff]
        %v256 = vld [vmem:[%s238 + $0x10] sm:$0xff]
        %v257 = vld [vmem:[%s238 + $0x18] sm:$0xff]
        %v258 = vld [vmem:[%s238 + $0x20] sm:$0xff]
        %v259 = vld [vmem:[%s238 + $0x28] sm:$0xff]
        %v260 = vld [vmem:[%s238 + $0x30] sm:$0xff]
        %v261 = vld [vmem:[%s238 + $0x38] sm:$0xff]
        %v262 = vld [vmem:[%s1] sm:$0xff]
        %v263 = vld [vmem:[%s1 + $0x8] sm:$0xff]
        %v264 = vld [vmem:[%s1 + $0x10] sm:$0xff]
        %v265 = vld [vmem:[%s1 + $0x18] sm:$0xff]
        %v266 = vld [vmem:[%s2] sm:$0x1]
        %vm267 = vcmask 130048
        %v269 = vsel %vm267, %v254, 0
        %v272 = vsel %vm267, %v255, 0
        %v275 = vsel %vm267, %v256, 0
        %v278 = vsel %vm267, %v257, 0
        %v281 = vsel %vm267, %v258, 0
        %v284 = vsel %vm267, %v259, 0
        %v287 = vsel %vm267, %v260, 0
        %v290 = vsel %vm267, %v261, 0
        %v293 = vsel %vm267, %v262, 0
        %v296 = vsel %vm267, %v263, 0
        %v299 = vsel %vm267, %v264, 0
        %v302 = vsel %vm267, %v265, 0
        %304 = vmatprep.subr.mxu0 0.0
        %305 = vmatpush1.xpose.msra.mxu0 %v293
        %306 = vmatprep.subr.mxu0 0.0
        %307 = vmatpush1.xpose.msra.mxu0 %v296
        %308 = vmatprep.subr.mxu0 0.0
        %309 = vmatpush1.xpose.msra.mxu0 %v299
        %310 = vmatprep.subr.mxu0 0.0
        %311 = vmatpush1.xpose.msra.mxu0 %v302
        %312 = vmatprep.subr.mxu0 0.0
        %313 = vmatpush1.xpose.msra.mxu0 0.0
        %314 = vmatprep.subr.mxu0 0.0
        %315 = vmatpush1.xpose.msra.mxu0 0.0
        %316 = vmatprep.subr.mxu0 0.0
        %317 = vmatpush1.xpose.msra.mxu0 0.0
        %318 = vmatprep.subr.mxu0 0.0
        %319 = vmatpush1.xpose.msra.mxu0 0.0
        %320 = vmatprep.subr.mxu0 0.0
        %321 = vmatpush1.xpose.msra.mxu0 0.0
        %322 = vmatprep.subr.mxu0 0.0
        %323 = vmatpush1.xpose.msra.mxu0 0.0
        %324 = vmatprep.subr.mxu0 0.0
        %325 = vmatpush1.xpose.msra.mxu0 0.0
        %326 = vmatprep.subr.mxu0 0.0
        %327 = vmatpush1.xpose.msra.mxu0 0.0
        %328 = vmatprep.subr.mxu0 0.0
        %329 = vmatpush1.xpose.msra.mxu0 0.0
        %330 = vmatprep.subr.mxu0 0.0
        %331 = vmatpush1.xpose.msra.mxu0 0.0
        %332 = vmatprep.subr.mxu0 0.0
        %333 = vmatpush1.xpose.msra.mxu0 0.0
        %334 = vmatprep.subr.mxu0 0.0
        %335 = vmatpush1.xpose.msra.mxu0 0.0
        %336 = vmatprep.subr.mxu0 0.0
        %337 = vmatpush1.xpose.msra.mxu0 0.0
        %338 = vmatprep.subr.mxu0 0.0
        %339 = vmatpush1.xpose.msra.mxu0 0.0
        %340 = vmatprep.subr.mxu0 0.0
        %341 = vmatpush1.xpose.msra.mxu0 0.0
        %342 = vmatprep.subr.mxu0 0.0
        %343 = vmatpush1.xpose.msra.mxu0 0.0
        %344 = vmatprep.subr.mxu0 0.0
        %345 = vmatpush1.xpose.msra.mxu0 0.0
        %346 = vmatprep.subr.mxu0 0.0
        %347 = vmatpush1.xpose.msra.mxu0 0.0
        %348 = vmatprep.subr.mxu0 0.0
        %349 = vmatpush1.xpose.msra.mxu0 0.0
        %350 = vmatprep.subr.mxu0 0.0
        %351 = vmatpush1.xpose.msra.mxu0 0.0
        %352 = vmatprep.subr.mxu0 0.0
        %353 = vmatpush1.xpose.msra.mxu0 0.0
        %354 = vmatprep.subr.mxu0 0.0
        %355 = vmatpush1.xpose.msra.mxu0 0.0
        %356 = vmatprep.subr.mxu0 0.0
        %357 = vmatpush1.xpose.msra.mxu0 0.0
        %358 = vmatprep.subr.mxu0 0.0
        %359 = vmatpush1.xpose.msra.mxu0 0.0
        %360 = vmatprep.subr.mxu0 0.0
        %361 = vmatpush1.xpose.msra.mxu0 0.0
        %362 = vmatprep.subr.mxu0 0.0
        %363 = vmatpush1.xpose.msra.mxu0 0.0
        %364 = vmatprep.subr.mxu0 0.0
        %365 = vmatpush1.xpose.msra.mxu0 0.0
        %366 = vmatprep.subr.mxu0 0.0
        %367 = vmatpush1.xpose.msra.mxu0 0.0
        %368 = vmatprep.mubr.f32.mxu0 0.0
        %369 = vmatmul.mubr.f32.gmra.mrb[0].mxu0 %v269
        %v370 = vpop.f32.mrb[0].mxu0
        %v371 = vadd.f32 0.0, %v370
        %v372 = vpop.f32.mrb[0].mxu0
        %373 = vmatprep.mubr.f32.mxu0 0.0
        %374 = vmatmul.mubr.f32.gmra.mrb[0].mxu0 %v272
        %v375 = vpop.f32.mrb[0].mxu0
        %v376 = vadd.f32 0.0, %v375
        %v377 = vpop.f32.mrb[0].mxu0
        %378 = vmatprep.mubr.f32.mxu0 0.0
        %379 = vmatmul.mubr.f32.gmra.mrb[0].mxu0 %v275
        %v380 = vpop.f32.mrb[0].mxu0
        %v381 = vadd.f32 0.0, %v380
        %v382 = vpop.f32.mrb[0].mxu0
        %383 = vmatprep.mubr.f32.mxu0 0.0
        %384 = vmatmul.mubr.f32.gmra.mrb[0].mxu0 %v278
        %v385 = vpop.f32.mrb[0].mxu0
        %v386 = vadd.f32 0.0, %v385
        %v387 = vpop.f32.mrb[0].mxu0
        %388 = vmatprep.mubr.f32.mxu0 0.0
        %389 = vmatmul.mubr.f32.gmra.mrb[0].mxu0 %v281
        %v390 = vpop.f32.mrb[0].mxu0
        %v391 = vadd.f32 0.0, %v390
        %v392 = vpop.f32.mrb[0].mxu0
        %393 = vmatprep.mubr.f32.mxu0 0.0
        %394 = vmatmul.mubr.f32.gmra.mrb[0].mxu0 %v284
        %v395 = vpop.f32.mrb[0].mxu0
        %v396 = vadd.f32 0.0, %v395
        %v397 = vpop.f32.mrb[0].mxu0
        %398 = vmatprep.mubr.f32.mxu0 0.0
        %399 = vmatmul.mubr.f32.gmra.mrb[0].mxu0 %v287
        %v400 = vpop.f32.mrb[0].mxu0
        %v401 = vadd.f32 0.0, %v400
        %v402 = vpop.f32.mrb[0].mxu0
        %403 = vmatprep.mubr.f32.mxu0 0.0
        %404 = vmatmul.mubr.f32.gmra.mrb[0].mxu0 %v290
        %v405 = vpop.f32.mrb[0].mxu0
        %v406 = vadd.f32 0.0, %v405
        %v407 = vpop.f32.mrb[0].mxu0
        %408 = vdwg.mxu0
        %v409 = vmul.f32 %v371, 2.0
        %v410 = vmul.f32 %v376, 2.0
        %v411 = vmul.f32 %v381, 2.0
        %v412 = vmul.f32 %v386, 2.0
        %v413 = vmul.f32 %v391, 2.0
        %v414 = vmul.f32 %v396, 2.0
        %v415 = vmul.f32 %v401, 2.0
        %v416 = vmul.f32 %v406, 2.0
        %v418 = vlaneseq
        %v419 = vshrl.u32 %v418, 7
        %v420 = vsub.s32 0, %v419
        %v421 = vrot.slane %v266, %v420
        %v423 = vsub.f32 %v421, %v409
        %v424 = vsub.f32 %v421, %v410
        %v425 = vsub.f32 %v421, %v411
        %v426 = vsub.f32 %v421, %v412
        %v427 = vsub.f32 %v421, %v413
        %v428 = vsub.f32 %v421, %v414
        %v429 = vsub.f32 %v421, %v415
        %v430 = vsub.f32 %v421, %v416
        %vm431 = vcmask 261120
        %v432 = vsel %vm431, %v423, inf
        %433 = vmin.xlane.f32.xlu0 %v432
        %v434 = vpop.xlane.xlu0 %433
        %v435 = vsel %vm431, %v424, inf
        %436 = vmin.xlane.f32.xlu0 %v435
        %v437 = vpop.xlane.xlu0 %436
        %v438 = vsel %vm431, %v425, inf
        %439 = vmin.xlane.f32.xlu0 %v438
        %v440 = vpop.xlane.xlu0 %439
        %v441 = vsel %vm431, %v426, inf
        %442 = vmin.xlane.f32.xlu0 %v441
        %v443 = vpop.xlane.xlu0 %442
        %v444 = vsel %vm431, %v427, inf
        %445 = vmin.xlane.f32.xlu0 %v444
        %v446 = vpop.xlane.xlu0 %445
        %v447 = vsel %vm431, %v428, inf
        %448 = vmin.xlane.f32.xlu0 %v447
        %v449 = vpop.xlane.xlu0 %448
        %v450 = vsel %vm431, %v429, inf
        %451 = vmin.xlane.f32.xlu0 %v450
        %v452 = vpop.xlane.xlu0 %451
        %v453 = vsel %vm431, %v430, inf
        %454 = vmin.xlane.f32.xlu0 %v453
        %v455 = vpop.xlane.xlu0 %454
        %v456 = vlaneseq
        %v457 = vand.u32 %v456, 127
        %vm458 = vcmp.eq.f32.partialorder %v423, %v434
        %vm459 = vcmp.eq.f32.partialorder %v424, %v437
        %vm460 = vcmp.eq.f32.partialorder %v425, %v440
        %vm461 = vcmp.eq.f32.partialorder %v426, %v443
        %vm462 = vcmp.eq.f32.partialorder %v427, %v446
        %vm463 = vcmp.eq.f32.partialorder %v428, %v449
        %vm464 = vcmp.eq.f32.partialorder %v429, %v452
        %vm465 = vcmp.eq.f32.partialorder %v430, %v455
        %v466 = vsel %vm458, %v457, 32
        %v467 = vsel %vm459, %v457, 32
        %v468 = vsel %vm460, %v457, 32
        %v469 = vsel %vm461, %v457, 32
        %v470 = vsel %vm462, %v457, 32
        %v471 = vsel %vm463, %v457, 32
        %v472 = vsel %vm464, %v457, 32
        %v473 = vsel %vm465, %v457, 32
        %v474 = vsel %vm431, %v466, 2147483647
        %v475 = vand.u32 %v474, 65535
        %v476 = vshra.s32 %v474, 16
        %v477 = vcvt.s32.f32 %v475
        %v478 = vcvt.s32.f32 %v476
        %479 = vmin.xlane.f32.xlu0 %v478
        %v480 = vpop.xlane.xlu0 %479
        %vm481 = vcmp.eq.f32.partialorder %v478, %v480
        %v482 = vsel %vm481, %v477, inf
        %483 = vmin.xlane.f32.xlu0 %v482
        %v484 = vpop.xlane.xlu0 %483
        %v485 = vcvt.f32.s32 %v484
        %v486 = vcvt.f32.s32 %v480
        %v487 = vshll.u32 %v486, 16
        %v488 = vadd.s32 %v487, %v485
        %v489 = vsel %vm431, %v467, 2147483647
        %v490 = vand.u32 %v489, 65535
        %v491 = vshra.s32 %v489, 16
        %v492 = vcvt.s32.f32 %v490
        %v493 = vcvt.s32.f32 %v491
        %494 = vmin.xlane.f32.xlu0 %v493
        %v495 = vpop.xlane.xlu0 %494
        %vm496 = vcmp.eq.f32.partialorder %v493, %v495
        %v497 = vsel %vm496, %v492, inf
        %498 = vmin.xlane.f32.xlu0 %v497
        %v499 = vpop.xlane.xlu0 %498
        %v500 = vcvt.f32.s32 %v499
        %v501 = vcvt.f32.s32 %v495
        %v502 = vshll.u32 %v501, 16
        %v503 = vadd.s32 %v502, %v500
        %v504 = vsel %vm431, %v468, 2147483647
        %v505 = vand.u32 %v504, 65535
        %v506 = vshra.s32 %v504, 16
        %v507 = vcvt.s32.f32 %v505
        %v508 = vcvt.s32.f32 %v506
        %509 = vmin.xlane.f32.xlu0 %v508
        %v510 = vpop.xlane.xlu0 %509
        %vm511 = vcmp.eq.f32.partialorder %v508, %v510
        %v512 = vsel %vm511, %v507, inf
        %513 = vmin.xlane.f32.xlu0 %v512
        %v514 = vpop.xlane.xlu0 %513
        %v515 = vcvt.f32.s32 %v514
        %v516 = vcvt.f32.s32 %v510
        %v517 = vshll.u32 %v516, 16
        %v518 = vadd.s32 %v517, %v515
        %v519 = vsel %vm431, %v469, 2147483647
        %v520 = vand.u32 %v519, 65535
        %v521 = vshra.s32 %v519, 16
        %v522 = vcvt.s32.f32 %v520
        %v523 = vcvt.s32.f32 %v521
        %524 = vmin.xlane.f32.xlu0 %v523
        %v525 = vpop.xlane.xlu0 %524
        %vm526 = vcmp.eq.f32.partialorder %v523, %v525
        %v527 = vsel %vm526, %v522, inf
        %528 = vmin.xlane.f32.xlu0 %v527
        %v529 = vpop.xlane.xlu0 %528
        %v530 = vcvt.f32.s32 %v529
        %v531 = vcvt.f32.s32 %v525
        %v532 = vshll.u32 %v531, 16
        %v533 = vadd.s32 %v532, %v530
        %v534 = vsel %vm431, %v470, 2147483647
        %v535 = vand.u32 %v534, 65535
        %v536 = vshra.s32 %v534, 16
        %v537 = vcvt.s32.f32 %v535
        %v538 = vcvt.s32.f32 %v536
        %539 = vmin.xlane.f32.xlu0 %v538
        %v540 = vpop.xlane.xlu0 %539
        %vm541 = vcmp.eq.f32.partialorder %v538, %v540
        %v542 = vsel %vm541, %v537, inf
        %543 = vmin.xlane.f32.xlu0 %v542
        %v544 = vpop.xlane.xlu0 %543
        %v545 = vcvt.f32.s32 %v544
        %v546 = vcvt.f32.s32 %v540
        %v547 = vshll.u32 %v546, 16
        %v548 = vadd.s32 %v547, %v545
        %v549 = vsel %vm431, %v471, 2147483647
        %v550 = vand.u32 %v549, 65535
        %v551 = vshra.s32 %v549, 16
        %v552 = vcvt.s32.f32 %v550
        %v553 = vcvt.s32.f32 %v551
        %554 = vmin.xlane.f32.xlu0 %v553
        %v555 = vpop.xlane.xlu0 %554
        %vm556 = vcmp.eq.f32.partialorder %v553, %v555
        %v557 = vsel %vm556, %v552, inf
        %558 = vmin.xlane.f32.xlu0 %v557
        %v559 = vpop.xlane.xlu0 %558
        %v560 = vcvt.f32.s32 %v559
        %v561 = vcvt.f32.s32 %v555
        %v562 = vshll.u32 %v561, 16
        %v563 = vadd.s32 %v562, %v560
        %v564 = vsel %vm431, %v472, 2147483647
        %v565 = vand.u32 %v564, 65535
        %v566 = vshra.s32 %v564, 16
        %v567 = vcvt.s32.f32 %v565
        %v568 = vcvt.s32.f32 %v566
        %569 = vmin.xlane.f32.xlu0 %v568
        %v570 = vpop.xlane.xlu0 %569
        %vm571 = vcmp.eq.f32.partialorder %v568, %v570
        %v572 = vsel %vm571, %v567, inf
        %573 = vmin.xlane.f32.xlu0 %v572
        %v574 = vpop.xlane.xlu0 %573
        %v575 = vcvt.f32.s32 %v574
        %v576 = vcvt.f32.s32 %v570
        %v577 = vshll.u32 %v576, 16
        %v578 = vadd.s32 %v577, %v575
        %v579 = vsel %vm431, %v473, 2147483647
        %v580 = vand.u32 %v579, 65535
        %v581 = vshra.s32 %v579, 16
        %v582 = vcvt.s32.f32 %v580
        %v583 = vcvt.s32.f32 %v581
        %584 = vmin.xlane.f32.xlu0 %v583
        %v585 = vpop.xlane.xlu0 %584
        %vm586 = vcmp.eq.f32.partialorder %v583, %v585
        %v587 = vsel %vm586, %v582, inf
        %588 = vmin.xlane.f32.xlu0 %v587
        %v589 = vpop.xlane.xlu0 %588
        %v590 = vcvt.f32.s32 %v589
        %v591 = vcvt.f32.s32 %v585
        %v592 = vshll.u32 %v591, 16
        %v593 = vadd.s32 %v592, %v590
        %v594 = vlaneseq
        %v595 = vshrl.u32 %v594, 7
        %v596 = vadd.s32 %v595, 8
        %v597 = vadd.s32 %v595, 16
        %v598 = vadd.s32 %v595, 24
        %v599 = vadd.s32 %v595, 32
        %v600 = vadd.s32 %v595, 40
        %v601 = vadd.s32 %v595, 48
        %v602 = vadd.s32 %v595, 56
        %s603 = smul.u32 %s20, 64
        %v604 = vstv %s603
        %v605 = vadd.s32 %v595, %v604
        %v606 = vadd.s32 %v596, %v604
        %v607 = vadd.s32 %v597, %v604
        %v608 = vadd.s32 %v598, %v604
        %v609 = vadd.s32 %v599, %v604
        %v610 = vadd.s32 %v600, %v604
        %v611 = vadd.s32 %v601, %v604
        %v612 = vadd.s32 %v602, %v604
        %vm613 = vcmp.lt.s32.totalorder %v605, 128
        %vm614 = vcmp.lt.s32.totalorder %v606, 128
        %vm615 = vcmp.lt.s32.totalorder %v607, 128
        %vm616 = vcmp.lt.s32.totalorder %v608, 128
        %vm617 = vcmp.lt.s32.totalorder %v609, 128
        %vm618 = vcmp.lt.s32.totalorder %v610, 128
        %vm619 = vcmp.lt.s32.totalorder %v611, 128
        %vm620 = vcmp.lt.s32.totalorder %v612, 128
        %vm621 = vcmp.eq.s32.totalorder %v457, %v488
        %vm622 = vcmp.eq.s32.totalorder %v457, %v503
        %vm623 = vcmp.eq.s32.totalorder %v457, %v518
        %vm624 = vcmp.eq.s32.totalorder %v457, %v533
        %vm625 = vcmp.eq.s32.totalorder %v457, %v548
        %vm626 = vcmp.eq.s32.totalorder %v457, %v563
        %vm627 = vcmp.eq.s32.totalorder %v457, %v578
        %vm628 = vcmp.eq.s32.totalorder %v457, %v593
        %v629 = vsel %vm613, 1, 0
        %v630 = vsel %vm614, 1, 0
        %v631 = vsel %vm615, 1, 0
        %v632 = vsel %vm616, 1, 0
        %v633 = vsel %vm617, 1, 0
        %v634 = vsel %vm618, 1, 0
        %v635 = vsel %vm619, 1, 0
        %v636 = vsel %vm620, 1, 0
        %vm637 = vcmp.eq.s32.totalorder %v629, 1
        %vm638 = vcmp.eq.s32.totalorder %v630, 1
        %vm639 = vcmp.eq.s32.totalorder %v631, 1
        %vm640 = vcmp.eq.s32.totalorder %v632, 1
        %vm641 = vcmp.eq.s32.totalorder %v633, 1
        %vm642 = vcmp.eq.s32.totalorder %v634, 1
        %vm643 = vcmp.eq.s32.totalorder %v635, 1
        %vm644 = vcmp.eq.s32.totalorder %v636, 1
        %vm645 = vmand %vm621, %vm637
        %vm646 = vmand %vm622, %vm638
        %vm647 = vmand %vm623, %vm639
        %vm648 = vmand %vm624, %vm640
        %vm649 = vmand %vm625, %vm641
        %vm650 = vmand %vm626, %vm642
        %vm651 = vmand %vm627, %vm643
        %vm652 = vmand %vm628, %vm644
        %vm653 = vmpackc.low %vm646, %vm645
        %vm654 = vmpackc.low %vm648, %vm647
        %vm655 = vmpackc.even %vm654, %vm653
        %vm656 = vmpackc.low %vm650, %vm649
        %vm657 = vmpackc.low %vm652, %vm651
        %vm658 = vmpackc.even %vm657, %vm656
        %v659 = vsel %vm655, 16843009, 0
        %v660 = vsel %vm658, 16843009, 0
        %661 = vst.msk [vmem:[%s250] sm:$0xff] %vm431, %v659
        %662 = vst.msk [vmem:[%s250 + $0x8] sm:$0xff] %vm431, %v660
        %v663 = vsel %vm645, 1, 0
        %v664 = vsel %vm646, 1, 0
        %v665 = vsel %vm647, 1, 0
        %v666 = vsel %vm648, 1, 0
        %v667 = vsel %vm649, 1, 0
        %v668 = vsel %vm650, 1, 0
        %v669 = vsel %vm651, 1, 0
        %v670 = vsel %vm652, 1, 0
        %v671 = vcvt.s32.f32 %v663
        %v672 = vcvt.s32.f32 %v664
        %v673 = vcvt.s32.f32 %v665
        %v674 = vcvt.s32.f32 %v666
        %v675 = vcvt.s32.f32 %v667
        %v676 = vcvt.s32.f32 %v668
        %v677 = vcvt.s32.f32 %v669
        %v678 = vcvt.s32.f32 %v670
        %v680 = vsel %vm431, %v671, 0
        %v683 = vsel %vm431, %v672, 0
        %v686 = vsel %vm431, %v673, 0
        %v689 = vsel %vm431, %v674, 0
        %v692 = vsel %vm431, %v675, 0
        %v695 = vsel %vm431, %v676, 0
        %v698 = vsel %vm431, %v677, 0
        %v701 = vsel %vm431, %v678, 0
        %703 = vmatprep.subr.mxu0 0.0
        %704 = vmatpush1.msra.mxu0 %v262
        %705 = vmatprep.subr.mxu0 0.0
        %706 = vmatpush1.msra.mxu0 %v263
        %707 = vmatprep.subr.mxu0 0.0
        %708 = vmatpush1.msra.mxu0 %v264
        %709 = vmatprep.subr.mxu0 0.0
        %710 = vmatpush1.msra.mxu0 %v265
        %711 = vmatprep.subr.mxu0 0.0
        %712 = vmatpush1.msra.mxu0 0.0
        %713 = vmatprep.subr.mxu0 0.0
        %714 = vmatpush1.msra.mxu0 0.0
        %715 = vmatprep.subr.mxu0 0.0
        %716 = vmatpush1.msra.mxu0 0.0
        %717 = vmatprep.subr.mxu0 0.0
        %718 = vmatpush1.msra.mxu0 0.0
        %719 = vmatprep.subr.mxu0 0.0
        %720 = vmatpush1.msra.mxu0 0.0
        %721 = vmatprep.subr.mxu0 0.0
        %722 = vmatpush1.msra.mxu0 0.0
        %723 = vmatprep.subr.mxu0 0.0
        %724 = vmatpush1.msra.mxu0 0.0
        %725 = vmatprep.subr.mxu0 0.0
        %726 = vmatpush1.msra.mxu0 0.0
        %727 = vmatprep.subr.mxu0 0.0
        %728 = vmatpush1.msra.mxu0 0.0
        %729 = vmatprep.subr.mxu0 0.0
        %730 = vmatpush1.msra.mxu0 0.0
        %731 = vmatprep.subr.mxu0 0.0
        %732 = vmatpush1.msra.mxu0 0.0
        %733 = vmatprep.subr.mxu0 0.0
        %734 = vmatpush1.msra.mxu0 0.0
        %735 = vmatprep.subr.mxu0 0.0
        %736 = vmatpush1.msra.mxu0 0.0
        %737 = vmatprep.subr.mxu0 0.0
        %738 = vmatpush1.msra.mxu0 0.0
        %739 = vmatprep.subr.mxu0 0.0
        %740 = vmatpush1.msra.mxu0 0.0
        %741 = vmatprep.subr.mxu0 0.0
        %742 = vmatpush1.msra.mxu0 0.0
        %743 = vmatprep.subr.mxu0 0.0
        %744 = vmatpush1.msra.mxu0 0.0
        %745 = vmatprep.subr.mxu0 0.0
        %746 = vmatpush1.msra.mxu0 0.0
        %747 = vmatprep.subr.mxu0 0.0
        %748 = vmatpush1.msra.mxu0 0.0
        %749 = vmatprep.subr.mxu0 0.0
        %750 = vmatpush1.msra.mxu0 0.0
        %751 = vmatprep.subr.mxu0 0.0
        %752 = vmatpush1.msra.mxu0 0.0
        %753 = vmatprep.subr.mxu0 0.0
        %754 = vmatpush1.msra.mxu0 0.0
        %755 = vmatprep.subr.mxu0 0.0
        %756 = vmatpush1.msra.mxu0 0.0
        %757 = vmatprep.subr.mxu0 0.0
        %758 = vmatpush1.msra.mxu0 0.0
        %759 = vmatprep.subr.mxu0 0.0
        %760 = vmatpush1.msra.mxu0 0.0
        %761 = vmatprep.subr.mxu0 0.0
        %762 = vmatpush1.msra.mxu0 0.0
        %763 = vmatprep.subr.mxu0 0.0
        %764 = vmatpush1.msra.mxu0 0.0
        %765 = vmatprep.subr.mxu0 0.0
        %766 = vmatpush1.msra.mxu0 0.0
        %767 = vmatprep.mubr.f32.mxu0 0.0
        %768 = vmatmul.mubr.f32.gmra.mrb[0].mxu0 %v680
        %v769 = vpop.f32.mrb[0].mxu0
        %v770 = vadd.f32 0.0, %v769
        %v771 = vpop.f32.mrb[0].mxu0
        %772 = vmatprep.mubr.f32.mxu0 0.0
        %773 = vmatmul.mubr.f32.gmra.mrb[0].mxu0 %v683
        %v774 = vpop.f32.mrb[0].mxu0
        %v775 = vadd.f32 0.0, %v774
        %v776 = vpop.f32.mrb[0].mxu0
        %777 = vmatprep.mubr.f32.mxu0 0.0
        %778 = vmatmul.mubr.f32.gmra.mrb[0].mxu0 %v686
        %v779 = vpop.f32.mrb[0].mxu0
        %v780 = vadd.f32 0.0, %v779
        %v781 = vpop.f32.mrb[0].mxu0
        %782 = vmatprep.mubr.f32.mxu0 0.0
        %783 = vmatmul.mubr.f32.gmra.mrb[0].mxu0 %v689
        %v784 = vpop.f32.mrb[0].mxu0
        %v785 = vadd.f32 0.0, %v784
        %v786 = vpop.f32.mrb[0].mxu0
        %787 = vmatprep.mubr.f32.mxu0 0.0
        %788 = vmatmul.mubr.f32.gmra.mrb[0].mxu0 %v692
        %v789 = vpop.f32.mrb[0].mxu0
        %v790 = vadd.f32 0.0, %v789
        %v791 = vpop.f32.mrb[0].mxu0
        %792 = vmatprep.mubr.f32.mxu0 0.0
        %793 = vmatmul.mubr.f32.gmra.mrb[0].mxu0 %v695
        %v794 = vpop.f32.mrb[0].mxu0
        %v795 = vadd.f32 0.0, %v794
        %v796 = vpop.f32.mrb[0].mxu0
        %797 = vmatprep.mubr.f32.mxu0 0.0
        %798 = vmatmul.mubr.f32.gmra.mrb[0].mxu0 %v698
        %v799 = vpop.f32.mrb[0].mxu0
        %v800 = vadd.f32 0.0, %v799
        %v801 = vpop.f32.mrb[0].mxu0
        %802 = vmatprep.mubr.f32.mxu0 0.0
        %803 = vmatmul.mubr.f32.gmra.mrb[0].mxu0 %v701
        %v804 = vpop.f32.mrb[0].mxu0
        %v805 = vadd.f32 0.0, %v804
        %v806 = vpop.f32.mrb[0].mxu0
        %807 = vdwg.mxu0
        %808 = vst.msk [vmem:[%s244] sm:$0xff] %vm267, %v770
        %809 = vst.msk [vmem:[%s244 + $0x8] sm:$0xff] %vm267, %v775
        %810 = vst.msk [vmem:[%s244 + $0x10] sm:$0xff] %vm267, %v780
        %811 = vst.msk [vmem:[%s244 + $0x18] sm:$0xff] %vm267, %v785
        %812 = vst.msk [vmem:[%s244 + $0x20] sm:$0xff] %vm267, %v790
        %813 = vst.msk [vmem:[%s244 + $0x28] sm:$0xff] %vm267, %v795
        %814 = vst.msk [vmem:[%s244 + $0x30] sm:$0xff] %vm267, %v800
        %815 = vst.msk [vmem:[%s244 + $0x38] sm:$0xff] %vm267, %v805
        %v816 = vsub.f32 %v770, %v254
        %v817 = vsub.f32 %v775, %v255
        %v818 = vsub.f32 %v780, %v256
        %v819 = vsub.f32 %v785, %v257
        %v820 = vsub.f32 %v790, %v258
        %v821 = vsub.f32 %v795, %v259
        %v822 = vsub.f32 %v800, %v260
        %v823 = vsub.f32 %v805, %v261
        %v824 = vsel %vm637, %v816, 0.0
        %v825 = vsel %vm638, %v817, 0.0
        %v826 = vsel %vm639, %v818, 0.0
        %v827 = vsel %vm640, %v819, 0.0
        %v828 = vsel %vm641, %v820, 0.0
        %v829 = vsel %vm642, %v821, 0.0
        %v830 = vsel %vm643, %v822, 0.0
        %v831 = vsel %vm644, %v823, 0.0
        %v832 = vmul.f32 %v824, %v824
        %v833 = vmul.f32 %v825, %v825
        %v834 = vmul.f32 %v826, %v826
        %v835 = vmul.f32 %v827, %v827
        %v836 = vmul.f32 %v828, %v828
        %v837 = vmul.f32 %v829, %v829
        %v838 = vmul.f32 %v830, %v830
        %v839 = vmul.f32 %v831, %v831
        %v840 = vsel %vm267, %v832, 0.0
        %v841 = vsel %vm267, %v833, 0.0
        %v842 = vadd.f32 %v840, %v841
        %v843 = vsel %vm267, %v834, 0.0
        %v844 = vadd.f32 %v842, %v843
        %v845 = vsel %vm267, %v835, 0.0
        %v846 = vadd.f32 %v844, %v845
        %v847 = vsel %vm267, %v836, 0.0
        %v848 = vadd.f32 %v846, %v847
        %v849 = vsel %vm267, %v837, 0.0
        %v850 = vadd.f32 %v848, %v849
        %v851 = vsel %vm267, %v838, 0.0
        %v852 = vadd.f32 %v850, %v851
        %v853 = vsel %vm267, %v839, 0.0
        %v854 = vadd.f32 %v852, %v853
        %855 = vadd.xlane.f32.xlu0 %v854
        %v856 = vpop.xlane.xlu0 %855
        %v857 = vrot.slane %v856, 4
        %v858 = vadd.f32 %v856, %v857
        %v859 = vrot.slane %v858, 2
        %v860 = vadd.f32 %v858, %v859
        %v861 = vrot.slane %v860, 1
        %v862 = vadd.f32 %v860, %v861
        %s863 = vtos %v862
        %vm864 = vcmask 523264
        %v866 = vsel %vm864, 1.0, 0
        %868 = vmatprep.subr.mxu0 0.0
        %869 = vmatpush1.msra.mxu0 %v671
        %870 = vmatprep.subr.mxu0 0.0
        %871 = vmatpush1.msra.mxu0 %v672
        %872 = vmatprep.subr.mxu0 0.0
        %873 = vmatpush1.msra.mxu0 %v673
        %874 = vmatprep.subr.mxu0 0.0
        %875 = vmatpush1.msra.mxu0 %v674
        %876 = vmatprep.subr.mxu0 0.0
        %877 = vmatpush1.msra.mxu0 %v675
        %878 = vmatprep.subr.mxu0 0.0
        %879 = vmatpush1.msra.mxu0 %v676
        %880 = vmatprep.subr.mxu0 0.0
        %881 = vmatpush1.msra.mxu0 %v677
        %882 = vmatprep.subr.mxu0 0.0
        %883 = vmatpush1.msra.mxu0 %v678
        %884 = vmatprep.subr.mxu0 0.0
        %885 = vmatpush1.msra.mxu0 0.0
        %886 = vmatprep.subr.mxu0 0.0
        %887 = vmatpush1.msra.mxu0 0.0
        %888 = vmatprep.subr.mxu0 0.0
        %889 = vmatpush1.msra.mxu0 0.0
        %890 = vmatprep.subr.mxu0 0.0
        %891 = vmatpush1.msra.mxu0 0.0
        %892 = vmatprep.subr.mxu0 0.0
        %893 = vmatpush1.msra.mxu0 0.0
        %894 = vmatprep.subr.mxu0 0.0
        %895 = vmatpush1.msra.mxu0 0.0
        %896 = vmatprep.subr.mxu0 0.0
        %897 = vmatpush1.msra.mxu0 0.0
        %898 = vmatprep.subr.mxu0 0.0
        %899 = vmatpush1.msra.mxu0 0.0
        %900 = vmatprep.subr.mxu0 0.0
        %901 = vmatpush1.msra.mxu0 0.0
        %902 = vmatprep.subr.mxu0 0.0
        %903 = vmatpush1.msra.mxu0 0.0
        %904 = vmatprep.subr.mxu0 0.0
        %905 = vmatpush1.msra.mxu0 0.0
        %906 = vmatprep.subr.mxu0 0.0
        %907 = vmatpush1.msra.mxu0 0.0
        %908 = vmatprep.subr.mxu0 0.0
        %909 = vmatpush1.msra.mxu0 0.0
        %910 = vmatprep.subr.mxu0 0.0
        %911 = vmatpush1.msra.mxu0 0.0
        %912 = vmatprep.subr.mxu0 0.0
        %913 = vmatpush1.msra.mxu0 0.0
        %914 = vmatprep.subr.mxu0 0.0
        %915 = vmatpush1.msra.mxu0 0.0
        %916 = vmatprep.subr.mxu0 0.0
        %917 = vmatpush1.msra.mxu0 0.0
        %918 = vmatprep.subr.mxu0 0.0
        %919 = vmatpush1.msra.mxu0 0.0
        %920 = vmatprep.subr.mxu0 0.0
        %921 = vmatpush1.msra.mxu0 0.0
        %922 = vmatprep.subr.mxu0 0.0
        %923 = vmatpush1.msra.mxu0 0.0
        %924 = vmatprep.subr.mxu0 0.0
        %925 = vmatpush1.msra.mxu0 0.0
        %926 = vmatprep.subr.mxu0 0.0
        %927 = vmatpush1.msra.mxu0 0.0
        %928 = vmatprep.subr.mxu0 0.0
        %929 = vmatpush1.msra.mxu0 0.0
        %930 = vmatprep.subr.mxu0 0.0
        %931 = vmatpush1.msra.mxu0 0.0
        %932 = vmatprep.mubr.f32.mxu0 0.0
        %933 = vmatmul.mubr.f32.gmra.mrb[0].mxu0 %v866
        %v934 = vpop.f32.mrb[0].mxu0
        %v935 = vadd.f32 0.0, %v934
        %v936 = vpop.f32.mrb[0].mxu0
        %937 = vdwg.mxu0
        %vm938 = vcmp.eq.s32.totalorder %v595, 0
        %vm939 = vcmp.eq.s32.totalorder %v457, 0
        %v940 = vstv %s863
        %v941 = vsel %vm939, %v940, 0.0
        %v942 = vlaneseq
        %v943 = vshrl.u32 %v942, 7
        %v944 = vsub.s32 0, %v943
        %v945 = vrot.slane %v935, %v944
        %v946 = vsel %vm938, %v945, %v941
        %vm947 = vcmask 254976
        %948 = vst.msk [vmem:[%s233] sm:$0x3] %vm947, %v946
        %s949 = smul.u32 8, %s20
        %p950 = scmp.lt.s32.totalorder %s949, 15
        %s951 = scalar_select %p950, %s949, 15
        %s952 = smul.addr %s951, 8
        %s953 = scalar_lea.vmem %s3, %s952
        %s954 = smul.u32 2, %s20
        %p955 = scmp.lt.s32.totalorder %s954, 3
        %s956 = scalar_select %p955, %s954, 3
        %s957 = smul.addr %s956, 8
        %s958 = scalar_lea.vmem %s4, %s957
        %s959 = sand.u32 %s148, 1
        %s960 = scalar_lea.sflag [#allocation3], %s959
        %s961 = sand.u32 %s148, 1
        %s962 = smul.addr %s961, 2
        %s963 = scalar_lea.vmem [#allocation2], %s962
        // Predicated region
        $region33: #{tpu_custom_call.1} parent=31 // pred_check
          %p964 = pneg %p106
        $region34: #{tpu_custom_call.1} parent=31 // pred_check_branch
          %966 = sbr.rel (%p964) target = $region36
        $region35: #{tpu_custom_call.1} parent=31 // pred_region
          %s967 = smul.u32 8, %s20
        $region36: #{tpu_custom_call.1} parent=31 // pred_fallthru
          _
        // Predicated region
        $region37: #{tpu_custom_call.1} parent=31 // pred_check
          %p968 = pneg %p132
        $region38: #{tpu_custom_call.1} parent=31 // pred_check_branch
          %970 = sbr.rel (%p968) target = $region40
        $region39: #{tpu_custom_call.1} parent=31 // pred_region
          %s971 = smul.u32 2, %s20
        $region40: #{tpu_custom_call.1} parent=31 // pred_fallthru
          _
        // Predicated region
        $region41: #{tpu_custom_call.1} parent=31 // pred_check
          %p972 = pneg %p158
        $region42: #{tpu_custom_call.1} parent=31 // pred_check_branch
          %974 = sbr.rel (%p972) target = $region44
        $region43: #{tpu_custom_call.1} parent=31 // pred_region
          %s976 = ssub.s32 32, 32
          %977 = vsyncadd %s960, %s976
          %s978 = smul.addr %s20, 32
          %s979 = scalar_lea.hbm %s5, %s978
          %s981 = sshll.u32 %s963, 4
          %s982 = int_to_ptr.vmem [resolvable:$true] %s981
          %984 = dma.vmem_to_hbm [thread:$0]  %s982, 32, %s979, %s960
        $region44: #{tpu_custom_call.1} parent=31 // pred_fallthru
          _
      $region32: #{tpu_custom_call.1} parent=5 // pred_fallthru
        _
      %p985 = scmp.le.s32.totalorder 2, %s15
      // Predicated region
      $region45: #{tpu_custom_call.1} parent=5 // pred_check
        %p986 = pneg %p985
      $region46: #{tpu_custom_call.1} parent=5 // pred_check_branch
        %988 = sbr.rel (%p986) target = $region48
      $region47: #{tpu_custom_call.1} parent=5 // pred_region
        %s989 = ssub.s32 %s15, 2
        // Predicated region
        $region49: #{tpu_custom_call.1} parent=47 // pred_check
          %p990 = pneg %p112
        $region50: #{tpu_custom_call.1} parent=47 // pred_check_branch
          %992 = sbr.rel (%p990) target = $region52
        $region51: #{tpu_custom_call.1} parent=47 // pred_region
          %s993 = smul.u32 8, %s21
          %p994 = scmp.lt.s32.totalorder %s993, 15
          %s995 = scalar_select %p994, %s993, 15
          %s996 = smul.addr %s995, 8
          %s997 = scalar_lea.vmem %s3, %s996
        $region52: #{tpu_custom_call.1} parent=47 // pred_fallthru
          _
        // Predicated region
        $region53: #{tpu_custom_call.1} parent=47 // pred_check
          %p998 = pneg %p138
        $region54: #{tpu_custom_call.1} parent=47 // pred_check_branch
          %1000 = sbr.rel (%p998) target = $region56
        $region55: #{tpu_custom_call.1} parent=47 // pred_region
          %s1001 = smul.u32 2, %s21
          %p1002 = scmp.lt.s32.totalorder %s1001, 3
          %s1003 = scalar_select %p1002, %s1001, 3
          %s1004 = smul.addr %s1003, 8
          %s1005 = scalar_lea.vmem %s4, %s1004
        $region56: #{tpu_custom_call.1} parent=47 // pred_fallthru
          _
        // Predicated region
        $region57: #{tpu_custom_call.1} parent=47 // pred_check
          %p1006 = pneg %p164
        $region58: #{tpu_custom_call.1} parent=47 // pred_check_branch
          %1008 = sbr.rel (%p1006) target = $region60
        $region59: #{tpu_custom_call.1} parent=47 // pred_region
          %s1009 = sand.u32 %s149, 1
          %s1010 = scalar_lea.sflag [#allocation3], %s1009
          %s1011 = sand.u32 %s149, 1
          %s1012 = smul.addr %s1011, 2
          %s1013 = scalar_lea.vmem [#allocation2], %s1012
          %1014 = dma.done %s1010, 32
        $region60: #{tpu_custom_call.1} parent=47 // pred_fallthru
          _
      $region48: #{tpu_custom_call.1} parent=5 // pred_fallthru
        _
    $region6: #{tpu_custom_call.1} parent=1 // loop_footer
      %s19 = sadd.s32 1, %s15
    $region7: #{tpu_custom_call.1} parent=1 // loop_footer_branch
      %14 = sbr.rel target = $region3
    $region8: #{tpu_custom_call.1} parent=1 // loop_exit
      _
    %1015 = vsyncpa [#allocation3], 1
    %s1016 = scalar_lea.sflag [#allocation3], 1
    %1017 = vsyncpa %s1016, 1

</llo_original>
